<compile_context>
chip_gen: v6e
topology: v6e:2x2x1
jax: 0.10.0
libtpu: 0.0.40
codegen_flags: <defaults>
</compile_context>

<pallas_src>
import jax
import jax.numpy as jnp
from jax.experimental import pallas as pl
from jax.experimental.pallas import tpu as pltpu

_LANE = 128
_SUBLANE = 8


def _round_up(n, m):
    return ((n + m - 1) // m) * m


def _mlp_kernel(x_ref, w1_ref, w234_ref, w5_ref, b_ref, o_ref):
    # x_ref:    [TB, In_nodes]   (batch tile; edge tile may contain garbage rows)
    # w1_ref:   [In_nodes, P]    (P = padded hidden/out width, 128-multiple)
    # w234_ref: [3, P, P]        (layers 2..4 stacked)
    # w5_ref:   [P, P]
    # b_ref:    [5, P] f32       (biases for layers 1..5, zero-padded)
    # o_ref:    [TB, Out_nodes]  (only the real output columns are stored)
    wdt = w1_ref.dtype           # matmul operand dtype (bf16 or f32)
    x = x_ref[...]
    b = b_ref[...]

    # Layer 1: bf16 (or f32) operands into the MXU, f32 accumulate, f32 elementwise.
    h = jnp.dot(x.astype(wdt), w1_ref[...],
                preferred_element_type=jnp.float32) + b[0:1, :]
    h = jnp.maximum(h, 0.0)                      # ReLU; dropout = identity (eval)

    for i in range(3):                           # layers 2, 3, 4
        h = jnp.dot(h.astype(wdt), w234_ref[i],
                    preferred_element_type=jnp.float32) + b[i + 1:i + 2, :]
        h = jnp.maximum(h, 0.0)

    y = jnp.dot(h.astype(wdt), w5_ref[...],
                preferred_element_type=jnp.float32) + b[4:5, :]
    # Store only the real output columns (block last dim == array last dim).
    o_ref[...] = y[:, :o_ref.shape[1]].astype(o_ref.dtype)


def _pack_params(params, matmul_dtype):
    """Zero-pad hidden/output dims to a common 128-multiple, consolidate operands,
    and cast the matmul weights to `matmul_dtype` (biases stay f32)."""
    in_nodes, hid = params["W1"].shape
    out_nodes = params["W5"].shape[1]
    p = max(_round_up(hid, _LANE), _round_up(out_nodes, _LANE))

    def pad2(a, rows, cols):
        return jnp.pad(a, ((0, rows - a.shape[0]), (0, cols - a.shape[1])))

    w1 = pad2(params["W1"], in_nodes, p).astype(matmul_dtype)
    w234 = jnp.stack([pad2(params[f"W{i}"], p, p) for i in (2, 3, 4)]).astype(matmul_dtype)
    w5 = pad2(params["W5"], p, p).astype(matmul_dtype)
    biases = jnp.stack(
        [jnp.pad(params[f"b{i}"][0], (0, p - params[f"b{i}"].shape[1]))
         for i in (1, 2, 3, 4, 5)]).astype(jnp.float32)
    return w1, w234, w5, biases, p, out_nodes


def learn_kappa_layers4_forward(x, params, *, batch_tile=8192,
                                matmul_dtype=jnp.bfloat16):
    """x: [B, In_nodes] f32.  params: dict with W1..W5 ([in,out]) and b1..b5 ([1,out])."""
    B, in_nodes = x.shape
    w1, w234, w5, biases, p, out_nodes = _pack_params(params, matmul_dtype)

    # Batch tile: multiple of 8 (sublane), capped by batch_tile, and capped so
    # large batches yield a grid of >= 2 steps (both v7x TensorCores get work).
    tb = min(_round_up(batch_tile, _SUBLANE),
             _round_up(max(pl.cdiv(B, 2), 1), _SUBLANE))
    grid = (pl.cdiv(B, tb),)          # edge block handled by Pallas (clipped writeback)

    weight_bytes = sum(int(a.size) * a.dtype.itemsize for a in (w1, w234, w5, biases))
    cost = pl.CostEstimate(
        flops=2 * B * (in_nodes * p + 4 * p * p),
        transcendentals=0,
        bytes_accessed=int(x.size) * x.dtype.itemsize + weight_bytes + B * out_nodes * 4,
    )

    out = pl.pallas_call(
        _mlp_kernel,
        out_shape=jax.ShapeDtypeStruct((B, out_nodes), jnp.float32),
        grid=grid,
        in_specs=[
            pl.BlockSpec((tb, in_nodes), lambda i: (i, 0)),        # x tiled over batch
            # Weights/biases: constant block index -> VMEM-resident; single buffer.
            pl.BlockSpec(w1.shape, lambda i: (0, 0), pipeline_mode=pl.Buffered(1)),
            pl.BlockSpec(w234.shape, lambda i: (0, 0, 0), pipeline_mode=pl.Buffered(1)),
            pl.BlockSpec(w5.shape, lambda i: (0, 0), pipeline_mode=pl.Buffered(1)),
            pl.BlockSpec(biases.shape, lambda i: (0, 0), pipeline_mode=pl.Buffered(1)),
        ],
        out_specs=pl.BlockSpec((tb, out_nodes), lambda i: (i, 0)),  # only real columns
        compiler_params=pltpu.CompilerParams(
            dimension_semantics=("parallel",),      # shard batch tiles across TCs (v7x)
            vmem_limit_bytes=32 * 1024 * 1024,      # safe on v5e/v6e/v7x
        ),
        cost_estimate=cost,
    )(x, w1, w234, w5, biases)

    return out


def init_params(key, in_nodes, hid, out_nodes):
    """Deterministic init mimicking nn.Linear's uniform(-1/sqrt(fan_in), 1/sqrt(fan_in))."""
    dims = [(in_nodes, hid), (hid, hid), (hid, hid), (hid, hid), (hid, out_nodes)]
    params = {}
    for i, (fan_in, fan_out) in enumerate(dims, start=1):
        key, kw, kb = jax.random.split(key, 3)
        bound = 1.0 / (fan_in ** 0.5)
        params[f"W{i}"] = jax.random.uniform(
            kw, (fan_in, fan_out), jnp.float32, minval=-bound, maxval=bound)
        params[f"b{i}"] = jax.random.uniform(
            kb, (1, fan_out), jnp.float32, minval=-bound, maxval=bound)
    return params


def _reference_forward(x, params):
    h = x
    for i in range(1, 5):
        h = jnp.maximum(h @ params[f"W{i}"] + params[f"b{i}"], 0.0)
    return h @ params["W5"] + params["b5"]


if __name__ == "__main__":
    In_nodes, Hid, Out_nodes = 8, 32, 4
    batch = 2

    key = jax.random.PRNGKey(0)
    key, kx = jax.random.split(key)
    x = jax.random.normal(kx, (batch, In_nodes), dtype=jnp.float32)
    params = init_params(key, In_nodes, Hid, Out_nodes)
    y_ref = _reference_forward(x, params)

    # Small-batch, f32 matmul path (tight tolerance vs f32 reference).
    y_f32 = learn_kappa_layers4_forward(x, params, matmul_dtype=jnp.float32)
    y_f32 = jax.block_until_ready(y_f32)
    assert y_f32.shape == (batch, Out_nodes)
    assert jnp.allclose(y_f32, y_ref, atol=1e-5, rtol=1e-5), \
        "mismatch vs JAX reference (small batch, f32 matmul)"

    # Small-batch, default bf16-MXU path (looser tolerance vs f32 reference).
    y_bf16 = learn_kappa_layers4_forward(x, params)
    y_bf16 = jax.block_until_ready(y_bf16)
    assert y_bf16.shape == (batch, Out_nodes)
    assert jnp.allclose(y_bf16, y_ref, atol=5e-2, rtol=5e-2), \
        "mismatch vs JAX reference (small batch, bf16 matmul)"

    # Multi-tile check: grid > 1 plus a partial (out-of-bounds) edge batch tile.
    key, kx2 = jax.random.split(key)
    x_big = jax.random.normal(kx2, (300, In_nodes), dtype=jnp.float32)
    y_big_ref = _reference_forward(x_big, params)

    y_big_f32 = learn_kappa_layers4_forward(x_big, params, batch_tile=128,
                                            matmul_dtype=jnp.float32)
    y_big_f32 = jax.block_until_ready(y_big_f32)
    assert y_big_f32.shape == (300, Out_nodes)
    assert jnp.allclose(y_big_f32, y_big_ref, atol=1e-5, rtol=1e-5), \
        "mismatch vs JAX reference (multi-tile, f32 matmul)"

    y_big_bf16 = learn_kappa_layers4_forward(x_big, params, batch_tile=128)
    y_big_bf16 = jax.block_until_ready(y_big_bf16)
    assert jnp.allclose(y_big_bf16, y_big_ref, atol=5e-2, rtol=5e-2), \
        "mismatch vs JAX reference (multi-tile, bf16 matmul)"

    print("KERNEL_OK")
</pallas_src>

<mosaic_0001>
module attributes {stable_mosaic.version = 11 : i64} {
  func.func @_mlp_kernel(%arg0: i32, %arg1: memref<8x8xf32, #tpu.memory_space<vmem>>, %arg2: memref<8x128xf32, #tpu.memory_space<vmem>>, %arg3: memref<3x128x128xf32, #tpu.memory_space<vmem>>, %arg4: memref<128x128xf32, #tpu.memory_space<vmem>>, %arg5: memref<5x128xf32, #tpu.memory_space<vmem>>, %arg6: memref<8x4xf32, #tpu.memory_space<vmem>>) attributes {dimension_semantics = [#tpu.dimension_semantics<parallel>], iteration_bounds = array<i64: 1>, scalar_prefetch = 0 : i64, scratch_operands = 0 : i64, tpu.core_type = #tpu.core_type<tc>, window_params = [{transform_indices = @transform_0, window_bounds = array<i64: 8, 8>}, {pipeline_mode = #tpu.pipeline_mode<synchronous>, transform_indices = @transform_1, window_bounds = array<i64: 8, 128>}, {pipeline_mode = #tpu.pipeline_mode<synchronous>, transform_indices = @transform_2, window_bounds = array<i64: 3, 128, 128>}, {pipeline_mode = #tpu.pipeline_mode<synchronous>, transform_indices = @transform_3, window_bounds = array<i64: 128, 128>}, {pipeline_mode = #tpu.pipeline_mode<synchronous>, transform_indices = @transform_4, window_bounds = array<i64: 5, 128>}, {transform_indices = @transform_5, window_bounds = array<i64: 8, 4>}]} {
    %c0 = arith.constant 0 : index
    %c0_0 = arith.constant 0 : index
    %0 = vector.load %arg1[%c0, %c0_0] : memref<8x8xf32, #tpu.memory_space<vmem>>, vector<8x8xf32>
    %c0_1 = arith.constant 0 : index
    %c0_2 = arith.constant 0 : index
    %1 = vector.load %arg5[%c0_1, %c0_2] : memref<5x128xf32, #tpu.memory_space<vmem>>, vector<5x128xf32>
    %c0_3 = arith.constant 0 : index
    %c0_4 = arith.constant 0 : index
    %2 = vector.load %arg2[%c0_3, %c0_4] : memref<8x128xf32, #tpu.memory_space<vmem>>, vector<8x128xf32>
    %cst = arith.constant dense<0.000000e+00> : vector<8x128xf32>
    %3 = tpu.matmul %0, %2, %cst {dimension_numbers = #tpu.dot_dimension_numbers<[1], [0], [0], [1], [0, 0, 1, 1], [], []>} : vector<8x8xf32>, vector<8x128xf32>, vector<8x128xf32> -> vector<8x128xf32>
    %4 = vector.extract_strided_slice %1 {offsets = [0, 0], sizes = [1, 128], strides = [1, 1]} : vector<5x128xf32> to vector<1x128xf32>
    %5 = vector.broadcast %4 : vector<1x128xf32> to vector<8x128xf32>
    %6 = arith.addf %3, %5 : vector<8x128xf32>
    %cst_5 = arith.constant 0.000000e+00 : f32
    %7 = vector.broadcast %cst_5 : f32 to vector<8x128xf32>
    %8 = arith.maximumf %6, %7 : vector<8x128xf32>
    %c0_6 = arith.constant 0 : index
    %c0_7 = arith.constant 0 : index
    %c0_8 = arith.constant 0 : index
    %9 = vector.load %arg3[%c0_6, %c0_7, %c0_8] : memref<3x128x128xf32, #tpu.memory_space<vmem>>, vector<1x128x128xf32>
    %10 = vector.shape_cast %9 : vector<1x128x128xf32> to vector<128x128xf32>
    %cst_9 = arith.constant dense<0.000000e+00> : vector<8x128xf32>
    %11 = tpu.matmul %8, %10, %cst_9 {dimension_numbers = #tpu.dot_dimension_numbers<[1], [0], [0], [1], [0, 0, 1, 1], [], []>} : vector<8x128xf32>, vector<128x128xf32>, vector<8x128xf32> -> vector<8x128xf32>
    %12 = vector.extract_strided_slice %1 {offsets = [1, 0], sizes = [1, 128], strides = [1, 1]} : vector<5x128xf32> to vector<1x128xf32>
    %13 = vector.broadcast %12 : vector<1x128xf32> to vector<8x128xf32>
    %14 = arith.addf %11, %13 : vector<8x128xf32>
    %cst_10 = arith.constant 0.000000e+00 : f32
    %15 = vector.broadcast %cst_10 : f32 to vector<8x128xf32>
    %16 = arith.maximumf %14, %15 : vector<8x128xf32>
    %c1 = arith.constant 1 : index
    %c0_11 = arith.constant 0 : index
    %c0_12 = arith.constant 0 : index
    %17 = vector.load %arg3[%c1, %c0_11, %c0_12] : memref<3x128x128xf32, #tpu.memory_space<vmem>>, vector<1x128x128xf32>
    %18 = vector.shape_cast %17 : vector<1x128x128xf32> to vector<128x128xf32>
    %cst_13 = arith.constant dense<0.000000e+00> : vector<8x128xf32>
    %19 = tpu.matmul %16, %18, %cst_13 {dimension_numbers = #tpu.dot_dimension_numbers<[1], [0], [0], [1], [0, 0, 1, 1], [], []>} : vector<8x128xf32>, vector<128x128xf32>, vector<8x128xf32> -> vector<8x128xf32>
    %20 = vector.extract_strided_slice %1 {offsets = [2, 0], sizes = [1, 128], strides = [1, 1]} : vector<5x128xf32> to vector<1x128xf32>
    %21 = vector.broadcast %20 : vector<1x128xf32> to vector<8x128xf32>
    %22 = arith.addf %19, %21 : vector<8x128xf32>
    %cst_14 = arith.constant 0.000000e+00 : f32
    %23 = vector.broadcast %cst_14 : f32 to vector<8x128xf32>
    %24 = arith.maximumf %22, %23 : vector<8x128xf32>
    %c2 = arith.constant 2 : index
    %c0_15 = arith.constant 0 : index
    %c0_16 = arith.constant 0 : index
    %25 = vector.load %arg3[%c2, %c0_15, %c0_16] : memref<3x128x128xf32, #tpu.memory_space<vmem>>, vector<1x128x128xf32>
    %26 = vector.shape_cast %25 : vector<1x128x128xf32> to vector<128x128xf32>
    %cst_17 = arith.constant dense<0.000000e+00> : vector<8x128xf32>
    %27 = tpu.matmul %24, %26, %cst_17 {dimension_numbers = #tpu.dot_dimension_numbers<[1], [0], [0], [1], [0, 0, 1, 1], [], []>} : vector<8x128xf32>, vector<128x128xf32>, vector<8x128xf32> -> vector<8x128xf32>
    %28 = vector.extract_strided_slice %1 {offsets = [3, 0], sizes = [1, 128], strides = [1, 1]} : vector<5x128xf32> to vector<1x128xf32>
    %29 = vector.broadcast %28 : vector<1x128xf32> to vector<8x128xf32>
    %30 = arith.addf %27, %29 : vector<8x128xf32>
    %cst_18 = arith.constant 0.000000e+00 : f32
    %31 = vector.broadcast %cst_18 : f32 to vector<8x128xf32>
    %32 = arith.maximumf %30, %31 : vector<8x128xf32>
    %c0_19 = arith.constant 0 : index
    %c0_20 = arith.constant 0 : index
    %33 = vector.load %arg4[%c0_19, %c0_20] : memref<128x128xf32, #tpu.memory_space<vmem>>, vector<128x128xf32>
    %cst_21 = arith.constant dense<0.000000e+00> : vector<8x128xf32>
    %34 = tpu.matmul %32, %33, %cst_21 {dimension_numbers = #tpu.dot_dimension_numbers<[1], [0], [0], [1], [0, 0, 1, 1], [], []>} : vector<8x128xf32>, vector<128x128xf32>, vector<8x128xf32> -> vector<8x128xf32>
    %35 = vector.extract_strided_slice %1 {offsets = [4, 0], sizes = [1, 128], strides = [1, 1]} : vector<5x128xf32> to vector<1x128xf32>
    %36 = vector.broadcast %35 : vector<1x128xf32> to vector<8x128xf32>
    %37 = arith.addf %34, %36 : vector<8x128xf32>
    %38 = vector.extract_strided_slice %37 {offsets = [0, 0], sizes = [8, 4], strides = [1, 1]} : vector<8x128xf32> to vector<8x4xf32>
    %c0_22 = arith.constant 0 : index
    %c0_23 = arith.constant 0 : index
    %39 = vector.load %arg6[%c0_22, %c0_23] : memref<8x4xf32, #tpu.memory_space<vmem>>, vector<8x4xf32>
    tpu.vector_store %arg6[%c0_22, %c0_23], %38 {strides = array<i32>} : memref<8x4xf32, #tpu.memory_space<vmem>>, vector<8x4xf32>,
    return
  }
  func.func @transform_0(%arg0: i32) -> (i32, i32) {
    %c0_i32 = arith.constant 0 : i32
    %c0_i32_0 = arith.constant 0 : i32
    return %arg0, %c0_i32 : i32, i32
  }
  func.func @transform_1(%arg0: i32) -> (i32, i32) {
    %c0_i32 = arith.constant 0 : i32
    %c0_i32_0 = arith.constant 0 : i32
    %c0_i32_1 = arith.constant 0 : i32
    return %c0_i32, %c0_i32_0 : i32, i32
  }
  func.func @transform_2(%arg0: i32) -> (i32, i32, i32) {
    %c0_i32 = arith.constant 0 : i32
    %c0_i32_0 = arith.constant 0 : i32
    %c0_i32_1 = arith.constant 0 : i32
    %c0_i32_2 = arith.constant 0 : i32
    return %c0_i32, %c0_i32_0, %c0_i32_1 : i32, i32, i32
  }
  func.func @transform_3(%arg0: i32) -> (i32, i32) {
    %c0_i32 = arith.constant 0 : i32
    %c0_i32_0 = arith.constant 0 : i32
    %c0_i32_1 = arith.constant 0 : i32
    return %c0_i32, %c0_i32_0 : i32, i32
  }
  func.func @transform_4(%arg0: i32) -> (i32, i32) {
    %c0_i32 = arith.constant 0 : i32
    %c0_i32_0 = arith.constant 0 : i32
    %c0_i32_1 = arith.constant 0 : i32
    return %c0_i32, %c0_i32_0 : i32, i32
  }
  func.func @transform_5(%arg0: i32) -> (i32, i32) {
    %c0_i32 = arith.constant 0 : i32
    %c0_i32_0 = arith.constant 0 : i32
    return %arg0, %c0_i32 : i32, i32
  }
}

</mosaic_0001>

<llo_original>
// kernel: tpu_custom_call.1
$region0: #{tpu_custom_call.1}
  #allocation0 [shape = 'u32[]', space=smem, size = 0x4, offset = 0x4, fixed_abs, tag = 'smem constant byte address 0x4 - core index']
  #allocation1 [shape = 'u32[144,128]{1,0:T(1,128)}', space=vmem, size = 0x12000, scoped, tag = 'internal scratch']
  %s0 = inlined_call_operand.hbm [shape: f32[2,8], index: 0, kind: input, shape index: {}]
  %s1 = inlined_call_operand.hbm [shape: f32[8,128], index: 1, kind: input, shape index: {}]
  %s2 = inlined_call_operand.hbm [shape: f32[3,128,128], index: 2, kind: input, shape index: {}]
  %s3 = inlined_call_operand.hbm [shape: f32[128,128], index: 3, kind: input, shape index: {}]
  %s4 = inlined_call_operand.hbm [shape: f32[5,128], index: 4, kind: input, shape index: {}]
  %s5 = inlined_call_operand.hbm [shape: f32[2,4], index: 5, kind: output, shape index: {}]
  %s6 = sld [smem:[#allocation0]]
  $region50: #{tpu_custom_call.1} parent=0
    _
  %s8 = ssub.s32 1, %s6
  %s9 = scalar_select 0, %s8, %s6
  $region1: #{tpu_custom_call.1} parent=0
    #allocation2 [shape = 'u8[4096]{0}', space=vmem, size = 0x1000, scoped, tag = 'input window, operand 0, single buffered']
    #allocation3 [shape = 's32[1]{0}', space=sflag, size = 0x4, scoped, tag = 'scoped memory for tpu_custom_call.1']
    #allocation4 [shape = 's32[1]{0}', space=sflag, size = 0x4, scoped, tag = 'scoped memory for tpu_custom_call.1']
    #allocation5 [shape = 'u8[4096]{0}', space=vmem, size = 0x1000, scoped, tag = 'input window, operand 1, single buffered']
    #allocation6 [shape = 's32[1]{0}', space=sflag, size = 0x4, scoped, tag = 'scoped memory for tpu_custom_call.1']
    #allocation7 [shape = 'u8[196608]{0}', space=vmem, size = 0x30000, scoped, tag = 'input window, operand 2, single buffered']
    #allocation8 [shape = 'u8[65536]{0}', space=vmem, size = 0x10000, scoped, tag = 'input window, operand 3, single buffered']
    #allocation9 [shape = 's32[1]{0}', space=sflag, size = 0x4, scoped, tag = 'scoped memory for tpu_custom_call.1']
    #allocation10 [shape = 'u8[4096]{0}', space=vmem, size = 0x1000, scoped, tag = 'input window, operand 4, single buffered']
    #allocation11 [shape = 'u8[4096]{0}', space=vmem, size = 0x1000, scoped, tag = 'output window, operand 0, single buffered']
    %10 = vsyncpa [#allocation3], 0
    %11 = vsyncpa [#allocation6], 0
    %12 = vsyncpa [#allocation9], 0
    %13 = vsyncpa [#allocation4], 0
    // Predicated region
    $region2: #{tpu_custom_call.1} parent=1 // pred_check
      _
    $region3: #{tpu_custom_call.1} parent=1 // pred_check_branch
      %15 = sbr.rel (0) target = $region5
    $region4: #{tpu_custom_call.1} parent=1 // pred_region
      %s17 = ssub.s32 128, 32
      %18 = vsyncadd [#allocation3], %s17
      %s19 = sshll.u32 [#allocation2], 4
      %s20 = int_to_ptr.vmem [resolvable:$true] %s19
      %25 = dma.hbm_to_vmem [thread:$0]  %s0, 32, %s20, [#allocation3], 32, 32, 2
    $region5: #{tpu_custom_call.1} parent=1 // pred_fallthru
      _
    // Predicated region
    $region6: #{tpu_custom_call.1} parent=1 // pred_check
      _
    $region7: #{tpu_custom_call.1} parent=1 // pred_check_branch
      %27 = sbr.rel (0) target = $region9
    $region8: #{tpu_custom_call.1} parent=1 // pred_region
      %s29 = ssub.s32 128, 128
      %30 = vsyncadd [#allocation6], %s29
      %s32 = sshll.u32 [#allocation5], 4
      %s33 = int_to_ptr.vmem [resolvable:$true] %s32
      %35 = dma.hbm_to_vmem [thread:$0]  %s1, 128, %s33, [#allocation6]
    $region9: #{tpu_custom_call.1} parent=1 // pred_fallthru
      _
    // Predicated region
    $region10: #{tpu_custom_call.1} parent=1 // pred_check
      _
    $region11: #{tpu_custom_call.1} parent=1 // pred_check_branch
      %37 = sbr.rel (0) target = $region13
    $region12: #{tpu_custom_call.1} parent=1 // pred_region
      %s39 = ssub.s32 6144, 6144
      %40 = vsyncadd [#allocation6], %s39
      %s41 = sshll.u32 [#allocation7], 4
      %s42 = int_to_ptr.vmem [resolvable:$true] %s41
      %47 = dma.hbm_to_vmem [thread:$0]  %s2, 6144, %s42, [#allocation6], 128, 128, 8
    $region13: #{tpu_custom_call.1} parent=1 // pred_fallthru
      _
    // Predicated region
    $region14: #{tpu_custom_call.1} parent=1 // pred_check
      _
    $region15: #{tpu_custom_call.1} parent=1 // pred_check_branch
      %49 = sbr.rel (0) target = $region17
    $region16: #{tpu_custom_call.1} parent=1 // pred_region
      %s51 = ssub.s32 2048, 2048
      %52 = vsyncadd [#allocation9], %s51
      %s53 = sshll.u32 [#allocation8], 4
      %s54 = int_to_ptr.vmem [resolvable:$true] %s53
      %59 = dma.hbm_to_vmem [thread:$0]  %s3, 2048, %s54, [#allocation9], 128, 128, 8
    $region17: #{tpu_custom_call.1} parent=1 // pred_fallthru
      _
    // Predicated region
    $region18: #{tpu_custom_call.1} parent=1 // pred_check
      _
    $region19: #{tpu_custom_call.1} parent=1 // pred_check_branch
      %61 = sbr.rel (0) target = $region21
    $region20: #{tpu_custom_call.1} parent=1 // pred_region
      %s63 = ssub.s32 128, 128
      %64 = vsyncadd [#allocation9], %s63
      %s66 = sshll.u32 [#allocation10], 4
      %s67 = int_to_ptr.vmem [resolvable:$true] %s66
      %69 = dma.hbm_to_vmem [thread:$0]  %s4, 128, %s67, [#allocation9]
    $region21: #{tpu_custom_call.1} parent=1 // pred_fallthru
      _
    // Predicated region
    $region22: #{tpu_custom_call.1} parent=1 // pred_check
      _
    $region23: #{tpu_custom_call.1} parent=1 // pred_check_branch
      %71 = sbr.rel (0) target = $region25
    $region24: #{tpu_custom_call.1} parent=1 // pred_region
      %72 = dma.done [#allocation3], 128
    $region25: #{tpu_custom_call.1} parent=1 // pred_fallthru
      _
    // Predicated region
    $region26: #{tpu_custom_call.1} parent=1 // pred_check
      _
    $region27: #{tpu_custom_call.1} parent=1 // pred_check_branch
      %74 = sbr.rel (0) target = $region29
    $region28: #{tpu_custom_call.1} parent=1 // pred_region
      %75 = dma.done [#allocation6], 128
    $region29: #{tpu_custom_call.1} parent=1 // pred_fallthru
      _
    // Predicated region
    $region30: #{tpu_custom_call.1} parent=1 // pred_check
      _
    $region31: #{tpu_custom_call.1} parent=1 // pred_check_branch
      %77 = sbr.rel (0) target = $region33
    $region32: #{tpu_custom_call.1} parent=1 // pred_region
      %78 = dma.done [#allocation6], 6144
    $region33: #{tpu_custom_call.1} parent=1 // pred_fallthru
      _
    // Predicated region
    $region34: #{tpu_custom_call.1} parent=1 // pred_check
      _
    $region35: #{tpu_custom_call.1} parent=1 // pred_check_branch
      %80 = sbr.rel (0) target = $region37
    $region36: #{tpu_custom_call.1} parent=1 // pred_region
      %81 = dma.done [#allocation9], 2048
    $region37: #{tpu_custom_call.1} parent=1 // pred_fallthru
      _
    // Predicated region
    $region38: #{tpu_custom_call.1} parent=1 // pred_check
      _
    $region39: #{tpu_custom_call.1} parent=1 // pred_check_branch
      %83 = sbr.rel (0) target = $region41
    $region40: #{tpu_custom_call.1} parent=1 // pred_region
      %84 = dma.done [#allocation9], 128
    $region41: #{tpu_custom_call.1} parent=1 // pred_fallthru
      _
    %v85 = vld [vmem:[#allocation2] sm:$0xff]
    %v86 = vld [vmem:[#allocation10] sm:$0x1f]
    %v87 = vld [vmem:[#allocation5] sm:$0xff]
    %v88 = vlaneseq
    %v89 = vshrl.u32 %v88, 7
    %v90 = vsub.s32 0, %v89
    %v91 = vrot.slane %v86, %v90
    %vm92 = vcmask 64512
    %v94 = vsel %vm92, %v85, 0
    %96 = vmatprep.subr.mxu0 0.0
    %97 = vmatpush1.msra.mxu0 0.0
    %98 = vmatprep.subr.mxu0 0.0
    %99 = vmatpush1.msra.mxu0 0.0
    %100 = vmatprep.subr.mxu0 0.0
    %101 = vmatpush1.msra.mxu0 0.0
    %102 = vmatprep.subr.mxu0 0.0
    %103 = vmatpush1.msra.mxu0 0.0
    %104 = vmatprep.subr.mxu0 0.0
    %105 = vmatpush1.msra.mxu0 0.0
    %106 = vmatprep.subr.mxu0 0.0
    %107 = vmatpush1.msra.mxu0 0.0
    %108 = vmatprep.subr.mxu0 0.0
    %109 = vmatpush1.msra.mxu0 0.0
    %110 = vmatprep.subr.mxu0 0.0
    %111 = vmatpush1.msra.mxu0 0.0
    %112 = vmatprep.subr.mxu0 0.0
    %113 = vmatpush1.msra.mxu0 0.0
    %114 = vmatprep.subr.mxu0 0.0
    %115 = vmatpush1.msra.mxu0 0.0
    %116 = vmatprep.subr.mxu0 0.0
    %117 = vmatpush1.msra.mxu0 0.0
    %118 = vmatprep.subr.mxu0 0.0
    %119 = vmatpush1.msra.mxu0 0.0
    %120 = vmatprep.subr.mxu0 0.0
    %121 = vmatpush1.msra.mxu0 0.0
    %122 = vmatprep.subr.mxu0 0.0
    %123 = vmatpush1.msra.mxu0 0.0
    %124 = vmatprep.subr.mxu0 0.0
    %125 = vmatpush1.msra.mxu0 0.0
    %126 = vmatprep.subr.mxu0 0.0
    %127 = vmatpush1.msra.mxu0 %v87
    %128 = vmatprep.subr.mxu0 0.0
    %129 = vmatpush2.msra.mxu0 0.0
    %130 = vmatprep.subr.mxu0 0.0
    %131 = vmatpush2.msra.mxu0 0.0
    %132 = vmatprep.subr.mxu0 0.0
    %133 = vmatpush2.msra.mxu0 0.0
    %134 = vmatprep.subr.mxu0 0.0
    %135 = vmatpush2.msra.mxu0 0.0
    %136 = vmatprep.subr.mxu0 0.0
    %137 = vmatpush2.msra.mxu0 0.0
    %138 = vmatprep.subr.mxu0 0.0
    %139 = vmatpush2.msra.mxu0 0.0
    %140 = vmatprep.subr.mxu0 0.0
    %141 = vmatpush2.msra.mxu0 0.0
    %142 = vmatprep.subr.mxu0 0.0
    %143 = vmatpush2.msra.mxu0 0.0
    %144 = vmatprep.subr.mxu0 0.0
    %145 = vmatpush2.msra.mxu0 0.0
    %146 = vmatprep.subr.mxu0 0.0
    %147 = vmatpush2.msra.mxu0 0.0
    %148 = vmatprep.subr.mxu0 0.0
    %149 = vmatpush2.msra.mxu0 0.0
    %150 = vmatprep.subr.mxu0 0.0
    %151 = vmatpush2.msra.mxu0 0.0
    %152 = vmatprep.subr.mxu0 0.0
    %153 = vmatpush2.msra.mxu0 0.0
    %154 = vmatprep.subr.mxu0 0.0
    %155 = vmatpush2.msra.mxu0 0.0
    %156 = vmatprep.subr.mxu0 0.0
    %157 = vmatpush2.msra.mxu0 0.0
    %158 = vmatprep.subr.mxu0 0.0
    %159 = vmatpush2.msra.mxu0 0.0
    %160 = vmatprep.mubr.f32.mxu0 0.0
    %161 = vmatmul.mubr.f32.gmra.mxu0 %v94
    %v162 = vpop.f32.mrf.mxu0
    %v163 = vadd.f32 %v91, %v162
    %v164 = vpop.f32.mrf.mxu0
    %165 = vdwg.mxu0
    %v166 = vmax.f32 %v163, 0.0
    %v167 = vld [vmem:[#allocation7] sm:$0xff]
    %v168 = vld [vmem:[#allocation7 + $0x8] sm:$0xff]
    %v169 = vld [vmem:[#allocation7 + $0x10] sm:$0xff]
    %v170 = vld [vmem:[#allocation7 + $0x18] sm:$0xff]
    %v171 = vld [vmem:[#allocation7 + $0x20] sm:$0xff]
    %v172 = vld [vmem:[#allocation7 + $0x28] sm:$0xff]
    %v173 = vld [vmem:[#allocation7 + $0x30] sm:$0xff]
    %v174 = vld [vmem:[#allocation7 + $0x38] sm:$0xff]
    %v175 = vld [vmem:[#allocation7 + $0x40] sm:$0xff]
    %v176 = vld [vmem:[#allocation7 + $0x48] sm:$0xff]
    %v177 = vld [vmem:[#allocation7 + $0x50] sm:$0xff]
    %v178 = vld [vmem:[#allocation7 + $0x58] sm:$0xff]
    %v179 = vld [vmem:[#allocation7 + $0x60] sm:$0xff]
    %v180 = vld [vmem:[#allocation7 + $0x68] sm:$0xff]
    %v181 = vld [vmem:[#allocation7 + $0x70] sm:$0xff]
    %v182 = vld [vmem:[#allocation7 + $0x78] sm:$0xff]
    %v183 = vlaneseq
    %v184 = vshrl.u32 %v183, 7
    %v185 = vsub.s32 1, %v184
    %v186 = vrot.slane %v86, %v185
    %187 = vmatprep.subr.mxu0 0.0
    %188 = vmatpush1.msra.mxu0 %v182
    %189 = vmatprep.subr.mxu0 0.0
    %190 = vmatpush1.msra.mxu0 %v181
    %191 = vmatprep.subr.mxu0 0.0
    %192 = vmatpush1.msra.mxu0 %v180
    %193 = vmatprep.subr.mxu0 0.0
    %194 = vmatpush1.msra.mxu0 %v179
    %195 = vmatprep.subr.mxu0 0.0
    %196 = vmatpush1.msra.mxu0 %v178
    %197 = vmatprep.subr.mxu0 0.0
    %198 = vmatpush1.msra.mxu0 %v177
    %199 = vmatprep.subr.mxu0 0.0
    %200 = vmatpush1.msra.mxu0 %v176
    %201 = vmatprep.subr.mxu0 0.0
    %202 = vmatpush1.msra.mxu0 %v175
    %203 = vmatprep.subr.mxu0 0.0
    %204 = vmatpush1.msra.mxu0 %v174
    %205 = vmatprep.subr.mxu0 0.0
    %206 = vmatpush1.msra.mxu0 %v173
    %207 = vmatprep.subr.mxu0 0.0
    %208 = vmatpush1.msra.mxu0 %v172
    %209 = vmatprep.subr.mxu0 0.0
    %210 = vmatpush1.msra.mxu0 %v171
    %211 = vmatprep.subr.mxu0 0.0
    %212 = vmatpush1.msra.mxu0 %v170
    %213 = vmatprep.subr.mxu0 0.0
    %214 = vmatpush1.msra.mxu0 %v169
    %215 = vmatprep.subr.mxu0 0.0
    %216 = vmatpush1.msra.mxu0 %v168
    %217 = vmatprep.subr.mxu0 0.0
    %218 = vmatpush1.msra.mxu0 %v167
    %219 = vmatprep.subr.mxu0 0.0
    %220 = vmatpush2.msra.mxu0 0.0
    %221 = vmatprep.subr.mxu0 0.0
    %222 = vmatpush2.msra.mxu0 0.0
    %223 = vmatprep.subr.mxu0 0.0
    %224 = vmatpush2.msra.mxu0 0.0
    %225 = vmatprep.subr.mxu0 0.0
    %226 = vmatpush2.msra.mxu0 0.0
    %227 = vmatprep.subr.mxu0 0.0
    %228 = vmatpush2.msra.mxu0 0.0
    %229 = vmatprep.subr.mxu0 0.0
    %230 = vmatpush2.msra.mxu0 0.0
    %231 = vmatprep.subr.mxu0 0.0
    %232 = vmatpush2.msra.mxu0 0.0
    %233 = vmatprep.subr.mxu0 0.0
    %234 = vmatpush2.msra.mxu0 0.0
    %235 = vmatprep.subr.mxu0 0.0
    %236 = vmatpush2.msra.mxu0 0.0
    %237 = vmatprep.subr.mxu0 0.0
    %238 = vmatpush2.msra.mxu0 0.0
    %239 = vmatprep.subr.mxu0 0.0
    %240 = vmatpush2.msra.mxu0 0.0
    %241 = vmatprep.subr.mxu0 0.0
    %242 = vmatpush2.msra.mxu0 0.0
    %243 = vmatprep.subr.mxu0 0.0
    %244 = vmatpush2.msra.mxu0 0.0
    %245 = vmatprep.subr.mxu0 0.0
    %246 = vmatpush2.msra.mxu0 0.0
    %247 = vmatprep.subr.mxu0 0.0
    %248 = vmatpush2.msra.mxu0 0.0
    %249 = vmatprep.subr.mxu0 0.0
    %250 = vmatpush2.msra.mxu0 0.0
    %251 = vmatprep.mubr.f32.mxu0 0.0
    %252 = vmatmul.mubr.f32.gmra.mxu0 %v166
    %v253 = vpop.f32.mrf.mxu0
    %v254 = vadd.f32 %v186, %v253
    %v255 = vpop.f32.mrf.mxu0
    %256 = vdwg.mxu0
    %v257 = vmax.f32 %v254, 0.0
    %s258 = scalar_lea.vmem [#allocation7], 128
    %v259 = vld [vmem:[%s258] sm:$0xff]
    %v260 = vld [vmem:[%s258 + $0x8] sm:$0xff]
    %v261 = vld [vmem:[%s258 + $0x10] sm:$0xff]
    %v262 = vld [vmem:[%s258 + $0x18] sm:$0xff]
    %v263 = vld [vmem:[%s258 + $0x20] sm:$0xff]
    %v264 = vld [vmem:[%s258 + $0x28] sm:$0xff]
    %v265 = vld [vmem:[%s258 + $0x30] sm:$0xff]
    %v266 = vld [vmem:[%s258 + $0x38] sm:$0xff]
    %v267 = vld [vmem:[%s258 + $0x40] sm:$0xff]
    %v268 = vld [vmem:[%s258 + $0x48] sm:$0xff]
    %v269 = vld [vmem:[%s258 + $0x50] sm:$0xff]
    %v270 = vld [vmem:[%s258 + $0x58] sm:$0xff]
    %v271 = vld [vmem:[%s258 + $0x60] sm:$0xff]
    %v272 = vld [vmem:[%s258 + $0x68] sm:$0xff]
    %v273 = vld [vmem:[%s258 + $0x70] sm:$0xff]
    %v274 = vld [vmem:[%s258 + $0x78] sm:$0xff]
    %v275 = vlaneseq
    %v276 = vshrl.u32 %v275, 7
    %v277 = vsub.s32 2, %v276
    %v278 = vrot.slane %v86, %v277
    %279 = vmatprep.subr.mxu0 0.0
    %280 = vmatpush1.msra.mxu0 %v274
    %281 = vmatprep.subr.mxu0 0.0
    %282 = vmatpush1.msra.mxu0 %v273
    %283 = vmatprep.subr.mxu0 0.0
    %284 = vmatpush1.msra.mxu0 %v272
    %285 = vmatprep.subr.mxu0 0.0
    %286 = vmatpush1.msra.mxu0 %v271
    %287 = vmatprep.subr.mxu0 0.0
    %288 = vmatpush1.msra.mxu0 %v270
    %289 = vmatprep.subr.mxu0 0.0
    %290 = vmatpush1.msra.mxu0 %v269
    %291 = vmatprep.subr.mxu0 0.0
    %292 = vmatpush1.msra.mxu0 %v268
    %293 = vmatprep.subr.mxu0 0.0
    %294 = vmatpush1.msra.mxu0 %v267
    %295 = vmatprep.subr.mxu0 0.0
    %296 = vmatpush1.msra.mxu0 %v266
    %297 = vmatprep.subr.mxu0 0.0
    %298 = vmatpush1.msra.mxu0 %v265
    %299 = vmatprep.subr.mxu0 0.0
    %300 = vmatpush1.msra.mxu0 %v264
    %301 = vmatprep.subr.mxu0 0.0
    %302 = vmatpush1.msra.mxu0 %v263
    %303 = vmatprep.subr.mxu0 0.0
    %304 = vmatpush1.msra.mxu0 %v262
    %305 = vmatprep.subr.mxu0 0.0
    %306 = vmatpush1.msra.mxu0 %v261
    %307 = vmatprep.subr.mxu0 0.0
    %308 = vmatpush1.msra.mxu0 %v260
    %309 = vmatprep.subr.mxu0 0.0
    %310 = vmatpush1.msra.mxu0 %v259
    %311 = vmatprep.subr.mxu0 0.0
    %312 = vmatpush2.msra.mxu0 0.0
    %313 = vmatprep.subr.mxu0 0.0
    %314 = vmatpush2.msra.mxu0 0.0
    %315 = vmatprep.subr.mxu0 0.0
    %316 = vmatpush2.msra.mxu0 0.0
    %317 = vmatprep.subr.mxu0 0.0
    %318 = vmatpush2.msra.mxu0 0.0
    %319 = vmatprep.subr.mxu0 0.0
    %320 = vmatpush2.msra.mxu0 0.0
    %321 = vmatprep.subr.mxu0 0.0
    %322 = vmatpush2.msra.mxu0 0.0
    %323 = vmatprep.subr.mxu0 0.0
    %324 = vmatpush2.msra.mxu0 0.0
    %325 = vmatprep.subr.mxu0 0.0
    %326 = vmatpush2.msra.mxu0 0.0
    %327 = vmatprep.subr.mxu0 0.0
    %328 = vmatpush2.msra.mxu0 0.0
    %329 = vmatprep.subr.mxu0 0.0
    %330 = vmatpush2.msra.mxu0 0.0
    %331 = vmatprep.subr.mxu0 0.0
    %332 = vmatpush2.msra.mxu0 0.0
    %333 = vmatprep.subr.mxu0 0.0
    %334 = vmatpush2.msra.mxu0 0.0
    %335 = vmatprep.subr.mxu0 0.0
    %336 = vmatpush2.msra.mxu0 0.0
    %337 = vmatprep.subr.mxu0 0.0
    %338 = vmatpush2.msra.mxu0 0.0
    %339 = vmatprep.subr.mxu0 0.0
    %340 = vmatpush2.msra.mxu0 0.0
    %341 = vmatprep.subr.mxu0 0.0
    %342 = vmatpush2.msra.mxu0 0.0
    %343 = vmatprep.mubr.f32.mxu0 0.0
    %344 = vmatmul.mubr.f32.gmra.mxu0 %v257
    %v345 = vpop.f32.mrf.mxu0
    %v346 = vadd.f32 %v278, %v345
    %v347 = vpop.f32.mrf.mxu0
    %348 = vdwg.mxu0
    %v349 = vmax.f32 %v346, 0.0
    %s350 = scalar_lea.vmem [#allocation7], 256
    %v351 = vld [vmem:[%s350] sm:$0xff]
    %v352 = vld [vmem:[%s350 + $0x8] sm:$0xff]
    %v353 = vld [vmem:[%s350 + $0x10] sm:$0xff]
    %v354 = vld [vmem:[%s350 + $0x18] sm:$0xff]
    %v355 = vld [vmem:[%s350 + $0x20] sm:$0xff]
    %v356 = vld [vmem:[%s350 + $0x28] sm:$0xff]
    %v357 = vld [vmem:[%s350 + $0x30] sm:$0xff]
    %v358 = vld [vmem:[%s350 + $0x38] sm:$0xff]
    %v359 = vld [vmem:[%s350 + $0x40] sm:$0xff]
    %v360 = vld [vmem:[%s350 + $0x48] sm:$0xff]
    %v361 = vld [vmem:[%s350 + $0x50] sm:$0xff]
    %v362 = vld [vmem:[%s350 + $0x58] sm:$0xff]
    %v363 = vld [vmem:[%s350 + $0x60] sm:$0xff]
    %v364 = vld [vmem:[%s350 + $0x68] sm:$0xff]
    %v365 = vld [vmem:[%s350 + $0x70] sm:$0xff]
    %v366 = vld [vmem:[%s350 + $0x78] sm:$0xff]
    %v367 = vlaneseq
    %v368 = vshrl.u32 %v367, 7
    %v369 = vsub.s32 3, %v368
    %v370 = vrot.slane %v86, %v369
    %371 = vmatprep.subr.mxu0 0.0
    %372 = vmatpush1.msra.mxu0 %v366
    %373 = vmatprep.subr.mxu0 0.0
    %374 = vmatpush1.msra.mxu0 %v365
    %375 = vmatprep.subr.mxu0 0.0
    %376 = vmatpush1.msra.mxu0 %v364
    %377 = vmatprep.subr.mxu0 0.0
    %378 = vmatpush1.msra.mxu0 %v363
    %379 = vmatprep.subr.mxu0 0.0
    %380 = vmatpush1.msra.mxu0 %v362
    %381 = vmatprep.subr.mxu0 0.0
    %382 = vmatpush1.msra.mxu0 %v361
    %383 = vmatprep.subr.mxu0 0.0
    %384 = vmatpush1.msra.mxu0 %v360
    %385 = vmatprep.subr.mxu0 0.0
    %386 = vmatpush1.msra.mxu0 %v359
    %387 = vmatprep.subr.mxu0 0.0
    %388 = vmatpush1.msra.mxu0 %v358
    %389 = vmatprep.subr.mxu0 0.0
    %390 = vmatpush1.msra.mxu0 %v357
    %391 = vmatprep.subr.mxu0 0.0
    %392 = vmatpush1.msra.mxu0 %v356
    %393 = vmatprep.subr.mxu0 0.0
    %394 = vmatpush1.msra.mxu0 %v355
    %395 = vmatprep.subr.mxu0 0.0
    %396 = vmatpush1.msra.mxu0 %v354
    %397 = vmatprep.subr.mxu0 0.0
    %398 = vmatpush1.msra.mxu0 %v353
    %399 = vmatprep.subr.mxu0 0.0
    %400 = vmatpush1.msra.mxu0 %v352
    %401 = vmatprep.subr.mxu0 0.0
    %402 = vmatpush1.msra.mxu0 %v351
    %403 = vmatprep.subr.mxu0 0.0
    %404 = vmatpush2.msra.mxu0 0.0
    %405 = vmatprep.subr.mxu0 0.0
    %406 = vmatpush2.msra.mxu0 0.0
    %407 = vmatprep.subr.mxu0 0.0
    %408 = vmatpush2.msra.mxu0 0.0
    %409 = vmatprep.subr.mxu0 0.0
    %410 = vmatpush2.msra.mxu0 0.0
    %411 = vmatprep.subr.mxu0 0.0
    %412 = vmatpush2.msra.mxu0 0.0
    %413 = vmatprep.subr.mxu0 0.0
    %414 = vmatpush2.msra.mxu0 0.0
    %415 = vmatprep.subr.mxu0 0.0
    %416 = vmatpush2.msra.mxu0 0.0
    %417 = vmatprep.subr.mxu0 0.0
    %418 = vmatpush2.msra.mxu0 0.0
    %419 = vmatprep.subr.mxu0 0.0
    %420 = vmatpush2.msra.mxu0 0.0
    %421 = vmatprep.subr.mxu0 0.0
    %422 = vmatpush2.msra.mxu0 0.0
    %423 = vmatprep.subr.mxu0 0.0
    %424 = vmatpush2.msra.mxu0 0.0
    %425 = vmatprep.subr.mxu0 0.0
    %426 = vmatpush2.msra.mxu0 0.0
    %427 = vmatprep.subr.mxu0 0.0
    %428 = vmatpush2.msra.mxu0 0.0
    %429 = vmatprep.subr.mxu0 0.0
    %430 = vmatpush2.msra.mxu0 0.0
    %431 = vmatprep.subr.mxu0 0.0
    %432 = vmatpush2.msra.mxu0 0.0
    %433 = vmatprep.subr.mxu0 0.0
    %434 = vmatpush2.msra.mxu0 0.0
    %435 = vmatprep.mubr.f32.mxu0 0.0
    %436 = vmatmul.mubr.f32.gmra.mxu0 %v349
    %v437 = vpop.f32.mrf.mxu0
    %v438 = vadd.f32 %v370, %v437
    %v439 = vpop.f32.mrf.mxu0
    %440 = vdwg.mxu0
    %v441 = vmax.f32 %v438, 0.0
    %v442 = vld [vmem:[#allocation8] sm:$0xff]
    %v443 = vld [vmem:[#allocation8 + $0x8] sm:$0xff]
    %v444 = vld [vmem:[#allocation8 + $0x10] sm:$0xff]
    %v445 = vld [vmem:[#allocation8 + $0x18] sm:$0xff]
    %v446 = vld [vmem:[#allocation8 + $0x20] sm:$0xff]
    %v447 = vld [vmem:[#allocation8 + $0x28] sm:$0xff]
    %v448 = vld [vmem:[#allocation8 + $0x30] sm:$0xff]
    %v449 = vld [vmem:[#allocation8 + $0x38] sm:$0xff]
    %v450 = vld [vmem:[#allocation8 + $0x40] sm:$0xff]
    %v451 = vld [vmem:[#allocation8 + $0x48] sm:$0xff]
    %v452 = vld [vmem:[#allocation8 + $0x50] sm:$0xff]
    %v453 = vld [vmem:[#allocation8 + $0x58] sm:$0xff]
    %v454 = vld [vmem:[#allocation8 + $0x60] sm:$0xff]
    %v455 = vld [vmem:[#allocation8 + $0x68] sm:$0xff]
    %v456 = vld [vmem:[#allocation8 + $0x70] sm:$0xff]
    %v457 = vld [vmem:[#allocation8 + $0x78] sm:$0xff]
    %v458 = vlaneseq
    %v459 = vshrl.u32 %v458, 7
    %v460 = vsub.s32 4, %v459
    %v461 = vrot.slane %v86, %v460
    %462 = vmatprep.subr.mxu0 0.0
    %463 = vmatpush1.msra.mxu0 %v457
    %464 = vmatprep.subr.mxu0 0.0
    %465 = vmatpush1.msra.mxu0 %v456
    %466 = vmatprep.subr.mxu0 0.0
    %467 = vmatpush1.msra.mxu0 %v455
    %468 = vmatprep.subr.mxu0 0.0
    %469 = vmatpush1.msra.mxu0 %v454
    %470 = vmatprep.subr.mxu0 0.0
    %471 = vmatpush1.msra.mxu0 %v453
    %472 = vmatprep.subr.mxu0 0.0
    %473 = vmatpush1.msra.mxu0 %v452
    %474 = vmatprep.subr.mxu0 0.0
    %475 = vmatpush1.msra.mxu0 %v451
    %476 = vmatprep.subr.mxu0 0.0
    %477 = vmatpush1.msra.mxu0 %v450
    %478 = vmatprep.subr.mxu0 0.0
    %479 = vmatpush1.msra.mxu0 %v449
    %480 = vmatprep.subr.mxu0 0.0
    %481 = vmatpush1.msra.mxu0 %v448
    %482 = vmatprep.subr.mxu0 0.0
    %483 = vmatpush1.msra.mxu0 %v447
    %484 = vmatprep.subr.mxu0 0.0
    %485 = vmatpush1.msra.mxu0 %v446
    %486 = vmatprep.subr.mxu0 0.0
    %487 = vmatpush1.msra.mxu0 %v445
    %488 = vmatprep.subr.mxu0 0.0
    %489 = vmatpush1.msra.mxu0 %v444
    %490 = vmatprep.subr.mxu0 0.0
    %491 = vmatpush1.msra.mxu0 %v443
    %492 = vmatprep.subr.mxu0 0.0
    %493 = vmatpush1.msra.mxu0 %v442
    %494 = vmatprep.subr.mxu0 0.0
    %495 = vmatpush2.msra.mxu0 0.0
    %496 = vmatprep.subr.mxu0 0.0
    %497 = vmatpush2.msra.mxu0 0.0
    %498 = vmatprep.subr.mxu0 0.0
    %499 = vmatpush2.msra.mxu0 0.0
    %500 = vmatprep.subr.mxu0 0.0
    %501 = vmatpush2.msra.mxu0 0.0
    %502 = vmatprep.subr.mxu0 0.0
    %503 = vmatpush2.msra.mxu0 0.0
    %504 = vmatprep.subr.mxu0 0.0
    %505 = vmatpush2.msra.mxu0 0.0
    %506 = vmatprep.subr.mxu0 0.0
    %507 = vmatpush2.msra.mxu0 0.0
    %508 = vmatprep.subr.mxu0 0.0
    %509 = vmatpush2.msra.mxu0 0.0
    %510 = vmatprep.subr.mxu0 0.0
    %511 = vmatpush2.msra.mxu0 0.0
    %512 = vmatprep.subr.mxu0 0.0
    %513 = vmatpush2.msra.mxu0 0.0
    %514 = vmatprep.subr.mxu0 0.0
    %515 = vmatpush2.msra.mxu0 0.0
    %516 = vmatprep.subr.mxu0 0.0
    %517 = vmatpush2.msra.mxu0 0.0
    %518 = vmatprep.subr.mxu0 0.0
    %519 = vmatpush2.msra.mxu0 0.0
    %520 = vmatprep.subr.mxu0 0.0
    %521 = vmatpush2.msra.mxu0 0.0
    %522 = vmatprep.subr.mxu0 0.0
    %523 = vmatpush2.msra.mxu0 0.0
    %524 = vmatprep.subr.mxu0 0.0
    %525 = vmatpush2.msra.mxu0 0.0
    %526 = vmatprep.mubr.f32.mxu0 0.0
    %527 = vmatmul.mubr.f32.gmra.mxu0 %v441
    %v528 = vpop.f32.mrf.mxu0
    %v529 = vadd.f32 %v461, %v528
    %v530 = vpop.f32.mrf.mxu0
    %531 = vdwg.mxu0
    %vm532 = vcmask 31744
    %533 = vst.msk [vmem:[#allocation11] sm:$0xff] %vm532, %v529
    // Predicated region
    $region42: #{tpu_custom_call.1} parent=1 // pred_check
      _
    $region43: #{tpu_custom_call.1} parent=1 // pred_check_branch
      %535 = sbr.rel (0) target = $region45
    $region44: #{tpu_custom_call.1} parent=1 // pred_region
      %s537 = ssub.s32 128, 32
      %538 = vsyncadd [#allocation4], %s537
      %s539 = sshll.u32 [#allocation11], 4
      %s540 = int_to_ptr.vmem [resolvable:$true] %s539
      %545 = dma.vmem_to_hbm [thread:$0]  %s540, 32, %s5, [#allocation4], 32, 32, 2
    $region45: #{tpu_custom_call.1} parent=1 // pred_fallthru
      _
    // Predicated region
    $region46: #{tpu_custom_call.1} parent=1 // pred_check
      _
    $region47: #{tpu_custom_call.1} parent=1 // pred_check_branch
      %547 = sbr.rel (0) target = $region49
    $region48: #{tpu_custom_call.1} parent=1 // pred_region
      %548 = dma.done [#allocation4], 128
    $region49: #{tpu_custom_call.1} parent=1 // pred_fallthru
      _
    %549 = vsyncpa [#allocation3], 1
    %550 = vsyncpa [#allocation6], 1
    %551 = vsyncpa [#allocation9], 1
    %552 = vsyncpa [#allocation4], 1

</llo_original>
